<compile_context>
chip_gen: v7x
topology: tpu7x:2x2x1
jax: 0.10.0
libtpu: 0.0.40
codegen_flags: <defaults>
</compile_context>

<pallas_src>
import functools

import jax
import jax.numpy as jnp
from jax.experimental import pallas as pl
from jax.experimental.pallas import tpu as pltpu

_SUB = 8            # sublane tile
_LANE = 128         # lane tile
_TARGET_BLOCK_ROWS = 2048   # 2048 * 128 * 4B = 1 MiB per f32 input block
                            # (2 inputs x 2 pipeline buffers = 4 MiB VMEM, safe on v5e/v6e/v7x)


def _mse_partial_kernel(pred_ref, real_ref, out_ref, *,
                        block_rows, valid_rows, need_mask):
    # Cast to f32 in-VMEM (inputs travel HBM->VMEM in native dtype).
    d = real_ref[...].astype(jnp.float32) - pred_ref[...].astype(jnp.float32)
    sq = d * d

    if need_mask:
        # Zero out rows past the true array extent (only the last block has any).
        row = (pl.program_id(0) * block_rows
               + jax.lax.broadcasted_iota(jnp.int32, (block_rows, _LANE), 0))
        sq = jnp.where(row < valid_rows, sq, 0.0)

    # Sublane-group partial reduction (block_rows,128) -> (8,128): a chain of
    # cheap VPU vreg adds that hides under DMA. The single cross-lane reduce
    # happens once, in the wrapper, over the tiny partials array.
    out_ref[...] = jnp.sum(sq.reshape(block_rows // _SUB, _SUB, _LANE), axis=0)


def mse_pallas(pred, real):
    """Equivalent of: mse = sum((real - pred)**2) / numel(real)."""
    assert pred.shape == real.shape
    n = int(pred.size)

    flat_p = pred.reshape(-1)
    flat_r = real.reshape(-1)

    # Pad (a copy) only when numel is not lane-aligned; zeros contribute 0 to
    # the sum. Row-count alignment to the block is handled by the in-kernel
    # mask, NOT by padding, so no full HBM copy is made for aligned inputs.
    pad = (-n) % _LANE
    if pad:
        flat_p = jnp.pad(flat_p, (0, pad))
        flat_r = jnp.pad(flat_r, (0, pad))
    rows = (n + pad) // _LANE

    # Large block per grid step; clamp to the (8-aligned) row count for small inputs.
    block_rows = min(_TARGET_BLOCK_ROWS, ((rows + _SUB - 1) // _SUB) * _SUB)
    grid = (rows + block_rows - 1) // block_rows
    need_mask = (rows % block_rows) != 0

    p2 = flat_p.reshape(rows, _LANE)
    r2 = flat_r.reshape(rows, _LANE)

    kernel = functools.partial(
        _mse_partial_kernel,
        block_rows=block_rows, valid_rows=rows, need_mask=need_mask)

    partials = pl.pallas_call(
        kernel,
        out_shape=jax.ShapeDtypeStruct((grid * _SUB, _LANE), jnp.float32),
        grid_spec=pltpu.PrefetchScalarGridSpec(
            num_scalar_prefetch=0,
            grid=(grid,),
            in_specs=[
                pl.BlockSpec((block_rows, _LANE), lambda i: (i, 0)),
                pl.BlockSpec((block_rows, _LANE), lambda i: (i, 0)),
            ],
            out_specs=pl.BlockSpec((_SUB, _LANE), lambda i: (i, 0)),
        ),
        compiler_params=pltpu.CompilerParams(
            # Independent per-block partial sums: fully parallel grid axis
            # (allows 2-TensorCore sharding on v7x; harmless on v5e/v6e).
            dimension_semantics=("parallel",),
        ),
    )(p2, r2)

    # Tiny final reduction + mean in the wrapper (uses the true element count).
    return jnp.sum(partials) / n


if __name__ == "__main__":
    key = jax.random.PRNGKey(0)
    k1, k2 = jax.random.split(key)
    # Small shapes consistent with the module's forward (any matching shapes).
    pred = jax.random.normal(k1, (2, 4, 16, 16), dtype=jnp.float32)
    real = jax.random.normal(k2, (2, 4, 16, 16), dtype=jnp.float32)

    mse = mse_pallas(pred, real)
    jax.block_until_ready(mse)

    # Reference check in plain JAX (same semantics as the PyTorch module).
    ref = jnp.sum((real - pred) ** 2) / pred.size
    assert jnp.allclose(mse, ref, rtol=1e-5, atol=1e-6), (mse, ref)

    print("KERNEL_OK")
</pallas_src>

<mosaic_0001>
module attributes {stable_mosaic.version = 11 : i64} {
  func.func @_mse_partial_kernel(%arg0: i32, %arg1: memref<16x128xf32, #tpu.memory_space<vmem>>, %arg2: memref<16x128xf32, #tpu.memory_space<vmem>>, %arg3: memref<8x128xf32, #tpu.memory_space<vmem>>) attributes {dimension_semantics = [#tpu.dimension_semantics<parallel>], iteration_bounds = array<i64: 1>, scalar_prefetch = 0 : i64, scratch_operands = 0 : i64, tpu.core_type = #tpu.core_type<tc>, window_params = [{transform_indices = @transform_0, window_bounds = array<i64: 16, 128>}, {transform_indices = @transform_1, window_bounds = array<i64: 16, 128>}, {transform_indices = @transform_2, window_bounds = array<i64: 8, 128>}]} {
    %c0 = arith.constant 0 : index
    %c0_0 = arith.constant 0 : index
    %0 = vector.load %arg2[%c0, %c0_0] : memref<16x128xf32, #tpu.memory_space<vmem>>, vector<16x128xf32>
    %c0_1 = arith.constant 0 : index
    %c0_2 = arith.constant 0 : index
    %1 = vector.load %arg1[%c0_1, %c0_2] : memref<16x128xf32, #tpu.memory_space<vmem>>, vector<16x128xf32>
    %2 = arith.subf %0, %1 : vector<16x128xf32>
    %3 = arith.mulf %2, %2 : vector<16x128xf32>
    %4 = vector.shape_cast %3 : vector<16x128xf32> to vector<2x8x128xf32>
    %cst = arith.constant dense<0.000000e+00> : vector<8x128xf32>
    %5 = vector.multi_reduction <add>, %4, %cst [0] : vector<2x8x128xf32> to vector<8x128xf32>
    %c0_3 = arith.constant 0 : index
    %c0_4 = arith.constant 0 : index
    %6 = vector.load %arg3[%c0_3, %c0_4] : memref<8x128xf32, #tpu.memory_space<vmem>>, vector<8x128xf32>
    tpu.vector_store %arg3[%c0_3, %c0_4], %5 {strides = array<i32>} : memref<8x128xf32, #tpu.memory_space<vmem>>, vector<8x128xf32>,
    return
  }
  func.func @transform_0(%arg0: i32) -> (i32, i32) {
    %c0_i32 = arith.constant 0 : i32
    %c0_i32_0 = arith.constant 0 : i32
    return %arg0, %c0_i32 : i32, i32
  }
  func.func @transform_1(%arg0: i32) -> (i32, i32) {
    %c0_i32 = arith.constant 0 : i32
    %c0_i32_0 = arith.constant 0 : i32
    return %arg0, %c0_i32 : i32, i32
  }
  func.func @transform_2(%arg0: i32) -> (i32, i32) {
    %c0_i32 = arith.constant 0 : i32
    %c0_i32_0 = arith.constant 0 : i32
    return %arg0, %c0_i32 : i32, i32
  }
}

</mosaic_0001>

<llo_original>
// kernel: tpu_custom_call.1
$region0: #{tpu_custom_call.1}
  #allocation0 [shape = 'u32[]', space=smem, size = 0x4, offset = 0x4, fixed_abs, tag = 'smem constant byte address 0x4 - core index']
  #allocation1 [shape = 'u32[144,128]{1,0:T(1,128)}', space=vmem, size = 0x12000, scoped, tag = 'internal scratch']
  %s0 = inlined_call_operand.hbm [shape: f32[16,128], index: 0, kind: input, shape index: {}]
  %s1 = inlined_call_operand.hbm [shape: f32[16,128], index: 1, kind: input, shape index: {}]
  %s2 = inlined_call_operand.hbm [shape: f32[8,128], index: 2, kind: output, shape index: {}]
  %s3 = sld [smem:[#allocation0]]
  $region26: #{tpu_custom_call.1} parent=0
    _
  %s5 = ssub.s32 1, %s3
  %s6 = scalar_select 0, %s5, %s3
  $region1: #{tpu_custom_call.1} parent=0
    #allocation2 [shape = 'u8[8192]{0}', space=vmem, size = 0x2000, scoped, tag = 'input window, operand 0, single buffered']
    #allocation3 [shape = 's32[1]{0}', space=sflag, size = 0x4, scoped, tag = 'scoped memory for tpu_custom_call.1']
    #allocation4 [shape = 's32[1]{0}', space=sflag, size = 0x4, scoped, tag = 'scoped memory for tpu_custom_call.1']
    #allocation5 [shape = 'u8[8192]{0}', space=vmem, size = 0x2000, scoped, tag = 'input window, operand 1, single buffered']
    #allocation6 [shape = 's32[1]{0}', space=sflag, size = 0x4, scoped, tag = 'scoped memory for tpu_custom_call.1']
    #allocation7 [shape = 'u8[4096]{0}', space=vmem, size = 0x1000, scoped, tag = 'output window, operand 0, single buffered']
    %7 = vsyncpa [#allocation3], 0
    %8 = vsyncpa [#allocation6], 0
    %9 = vsyncpa [#allocation4], 0
    // Predicated region
    $region2: #{tpu_custom_call.1} parent=1 // pred_check
      _
    $region3: #{tpu_custom_call.1} parent=1 // pred_check_branch
      %11 = sbr.rel (0) target = $region5
    $region4: #{tpu_custom_call.1} parent=1 // pred_region
      %s13 = ssub.s32 256, 256
      %14 = vsyncadd [#allocation3], %s13
      %s15 = sshll.u32 [#allocation2], 4
      %s16 = int_to_ptr.vmem [resolvable:$true] %s15
      %21 = dma.hbm_to_vmem [thread:$0]  %s0, 256, %s16, [#allocation3], 128, 128, 8
    $region5: #{tpu_custom_call.1} parent=1 // pred_fallthru
      _
    // Predicated region
    $region6: #{tpu_custom_call.1} parent=1 // pred_check
      _
    $region7: #{tpu_custom_call.1} parent=1 // pred_check_branch
      %23 = sbr.rel (0) target = $region9
    $region8: #{tpu_custom_call.1} parent=1 // pred_region
      %s25 = ssub.s32 256, 256
      %26 = vsyncadd [#allocation6], %s25
      %s27 = sshll.u32 [#allocation5], 4
      %s28 = int_to_ptr.vmem [resolvable:$true] %s27
      %33 = dma.hbm_to_vmem [thread:$0]  %s1, 256, %s28, [#allocation6], 128, 128, 8
    $region9: #{tpu_custom_call.1} parent=1 // pred_fallthru
      _
    // Predicated region
    $region10: #{tpu_custom_call.1} parent=1 // pred_check
      _
    $region11: #{tpu_custom_call.1} parent=1 // pred_check_branch
      %35 = sbr.rel (0) target = $region13
    $region12: #{tpu_custom_call.1} parent=1 // pred_region
      %36 = dma.done [#allocation3], 256
    $region13: #{tpu_custom_call.1} parent=1 // pred_fallthru
      _
    // Predicated region
    $region14: #{tpu_custom_call.1} parent=1 // pred_check
      _
    $region15: #{tpu_custom_call.1} parent=1 // pred_check_branch
      %38 = sbr.rel (0) target = $region17
    $region16: #{tpu_custom_call.1} parent=1 // pred_region
      %39 = dma.done [#allocation6], 256
    $region17: #{tpu_custom_call.1} parent=1 // pred_fallthru
      _
    %v40 = vld [vmem:[#allocation5] sm:$0xff]
    %v41 = vld [vmem:[#allocation5 + $0x8] sm:$0xff]
    %v42 = vld [vmem:[#allocation2] sm:$0xff]
    %v43 = vld [vmem:[#allocation2 + $0x8] sm:$0xff]
    %v44 = vsub.f32 %v40, %v42
    %v45 = vsub.f32 %v41, %v43
    %v46 = vmul.f32 %v44, %v44
    %v47 = vmul.f32 %v45, %v45
    %v48 = vadd.f32 %v46, %v47
    %49 = vst [vmem:[#allocation7] sm:$0xff] %v48
    // Predicated region
    $region18: #{tpu_custom_call.1} parent=1 // pred_check
      _
    $region19: #{tpu_custom_call.1} parent=1 // pred_check_branch
      %51 = sbr.rel (0) target = $region21
    $region20: #{tpu_custom_call.1} parent=1 // pred_region
      %s53 = ssub.s32 128, 128
      %54 = vsyncadd [#allocation4], %s53
      %s56 = sshll.u32 [#allocation7], 4
      %s57 = int_to_ptr.vmem [resolvable:$true] %s56
      %59 = dma.vmem_to_hbm [thread:$0]  %s57, 128, %s2, [#allocation4]
    $region21: #{tpu_custom_call.1} parent=1 // pred_fallthru
      _
    // Predicated region
    $region22: #{tpu_custom_call.1} parent=1 // pred_check
      _
    $region23: #{tpu_custom_call.1} parent=1 // pred_check_branch
      %61 = sbr.rel (0) target = $region25
    $region24: #{tpu_custom_call.1} parent=1 // pred_region
      %62 = dma.done [#allocation4], 128
    $region25: #{tpu_custom_call.1} parent=1 // pred_fallthru
      _
    %63 = vsyncpa [#allocation3], 1
    %64 = vsyncpa [#allocation6], 1
    %65 = vsyncpa [#allocation4], 1

</llo_original>
